<compile_context>
chip_gen: v7x
topology: tpu7x:2x2x1
jax: 0.10.0
libtpu: 0.0.40
codegen_flags: <defaults>
</compile_context>

<pallas_src>
import jax
import jax.numpy as jnp
from jax.experimental import pallas as pl
from jax.experimental.pallas import tpu as pltpu

LANE = 128
SUBLANE = 8


def _round_up(x, m):
    return ((x + m - 1) // m) * m


def _rec_kernel(drug_ref, cell_ref,
                wde_ref, bde_ref, wdd_ref, bdd_ref,   # drug encoder / decoder
                wce_ref, bce_ref, wcd_ref, bcd_ref,   # cell encoder / decoder
                final_ref, drec_ref, crec_ref):
    # Activations may arrive as f32 (pass-through) or bf16 (padded in wrapper);
    # casting here is a free VPU op and avoids a separate XLA cast pass.
    drug = drug_ref[...].astype(jnp.bfloat16)               # (TB, Ddp)
    cell = cell_ref[...].astype(jnp.bfloat16)               # (TB, Dcp)

    # Drug autoencoder: code = relu(x @ We + be); rec = code @ Wd + bd
    d_code = jnp.dot(drug, wde_ref[...], preferred_element_type=jnp.float32)
    d_code = jnp.maximum(d_code + bde_ref[...], 0.0)        # f32 (TB, Hp)
    d_rec = jnp.dot(d_code.astype(jnp.bfloat16), wdd_ref[...],
                    preferred_element_type=jnp.float32) + bdd_ref[...]

    # Cell-line autoencoder
    c_code = jnp.dot(cell, wce_ref[...], preferred_element_type=jnp.float32)
    c_code = jnp.maximum(c_code + bce_ref[...], 0.0)        # f32 (TB, Hp)
    c_rec = jnp.dot(c_code.astype(jnp.bfloat16), wcd_ref[...],
                    preferred_element_type=jnp.float32) + bcd_ref[...]

    # torch.sum(torch.mul(drug_code, cell_line_code), dim=1).view(-1, 1)
    # Stored as the true (TB, 1) column: 4 B/row of HBM writeback (the old
    # 128-lane slab wrote 512 B/row). Reconstruction stores stay lane-dense.
    final_ref[...] = jnp.sum(d_code * c_code, axis=1, keepdims=True)

    drec_ref[...] = d_rec.astype(drec_ref.dtype)
    crec_ref[...] = c_rec.astype(crec_ref.dtype)
    # TODO(synk): out_activation is None in this instantiation; if a sigmoid
    # were supplied, apply jax.nn.sigmoid to final_ref here.


def prepare_params(params):
    """One-time pad (+ bf16 cast for weights) to MXU-friendly 128-multiples.

    Run once per model; keeps the per-forward wrapper free of weight pad/cast
    passes. Zero padding keeps the math exact.
    """
    def padw(w):
        r, c = w.shape
        return jnp.pad(w.astype(jnp.bfloat16),
                       ((0, _round_up(r, LANE) - r), (0, _round_up(c, LANE) - c)))

    def padb(b):
        b = b.reshape(1, -1).astype(jnp.float32)
        c = b.shape[1]
        return jnp.pad(b, ((0, 0), (0, _round_up(c, LANE) - c)))

    return {
        "w_drug_enc": padw(params["w_drug_enc"]), "b_drug_enc": padb(params["b_drug_enc"]),
        "w_drug_dec": padw(params["w_drug_dec"]), "b_drug_dec": padb(params["b_drug_dec"]),
        "w_cell_enc": padw(params["w_cell_enc"]), "b_cell_enc": padb(params["b_cell_enc"]),
        "w_cell_dec": padw(params["w_cell_dec"]), "b_cell_dec": padb(params["b_cell_dec"]),
    }


def rec_system_forward(drug_features, cell_features, prepped, tile_b=1024):
    B, Dd = drug_features.shape
    Bc, Dc = cell_features.shape
    assert Bc == B
    Ddp, Hp = prepped["w_drug_enc"].shape
    Dcp = prepped["w_cell_enc"].shape[0]
    assert Dd <= Ddp and Dc <= Dcp

    # Batch tile: multiple of 8 sublanes; capped at half the padded batch so
    # the "parallel" grid keeps >= 2 steps (both v7x TensorCores get work).
    tile_b = max(SUBLANE, _round_up(tile_b, SUBLANE))
    b8 = _round_up(B, SUBLANE)
    if b8 >= 2 * SUBLANE:
        half = max(SUBLANE, (b8 // 2) // SUBLANE * SUBLANE)
        tile_b = min(tile_b, half)
    else:
        tile_b = min(tile_b, b8)
    Bp = _round_up(B, tile_b)
    num_tiles = Bp // tile_b

    # Activations: pad (+cast) only if the shape actually needs it; otherwise
    # pass the raw f32 array straight to the kernel (cast happens in-kernel).
    def maybe_pad_act(x, rows, cols):
        if x.shape == (rows, cols):
            return x
        return jnp.pad(x.astype(jnp.bfloat16),
                       ((0, rows - x.shape[0]), (0, cols - x.shape[1])))

    drug_in = maybe_pad_act(drug_features, Bp, Ddp)
    cell_in = maybe_pad_act(cell_features, Bp, Dcp)

    act = lambda cols: pl.BlockSpec((tile_b, cols), lambda i: (i, 0))
    resident = lambda r, c: pl.BlockSpec((r, c), lambda i: (0, 0))

    # VMEM estimate: double-buffered activation/output tiles + resident
    # (double-buffered by default) weights + f32 intermediates, 2x margin,
    # clamped per-generation to ~75% of physical VMEM.
    w_keys = ("w_drug_enc", "b_drug_enc", "w_drug_dec", "b_drug_dec",
              "w_cell_enc", "b_cell_enc", "w_cell_dec", "b_cell_dec")
    w_bytes = sum(prepped[k].size * prepped[k].dtype.itemsize for k in w_keys)
    in_tile_bytes = 2 * tile_b * (Ddp * drug_in.dtype.itemsize +
                                  Dcp * cell_in.dtype.itemsize)
    out_tile_bytes = 2 * tile_b * (1 * 4 + (Ddp + Dcp) * 2)
    interm_bytes = 4 * tile_b * Hp * 4
    need = 2 * w_bytes + in_tile_bytes + out_tile_bytes + interm_bytes
    try:
        vmem_cap = int(pltpu.get_tpu_info().vmem_capacity_bytes)
    except Exception:
        vmem_cap = 64 << 20          # conservative: v7x has 64 MiB per TensorCore
    vmem_limit = int(min(max(2 * need, 8 << 20), (3 * vmem_cap) // 4))

    flops = 4 * Bp * Hp * (Ddp + Dcp)                       # four matmuls
    bytes_accessed = (drug_in.size * drug_in.dtype.itemsize
                      + cell_in.size * cell_in.dtype.itemsize
                      + w_bytes
                      + Bp * 4                              # final (f32 column)
                      + Bp * (Ddp + Dcp) * 2)               # bf16 reconstructions

    final_p, drec_p, crec_p = pl.pallas_call(
        _rec_kernel,
        out_shape=(
            jax.ShapeDtypeStruct((Bp, 1), jnp.float32),     # final
            jax.ShapeDtypeStruct((Bp, Ddp), jnp.bfloat16),  # drug reconstruction
            jax.ShapeDtypeStruct((Bp, Dcp), jnp.bfloat16),  # cell reconstruction
        ),
        grid=(num_tiles,),
        in_specs=[
            act(Ddp), act(Dcp),
            resident(Ddp, Hp), resident(1, Hp), resident(Hp, Ddp), resident(1, Ddp),
            resident(Dcp, Hp), resident(1, Hp), resident(Hp, Dcp), resident(1, Dcp),
        ],
        out_specs=(
            pl.BlockSpec((tile_b, 1), lambda i: (i, 0)),
            act(Ddp), act(Dcp),
        ),
        compiler_params=pltpu.CompilerParams(
            dimension_semantics=("parallel",),
            vmem_limit_bytes=vmem_limit,
        ),
        cost_estimate=pl.CostEstimate(
            flops=int(flops), transcendentals=0, bytes_accessed=int(bytes_accessed)),
    )(drug_in, cell_in,
      prepped["w_drug_enc"], prepped["b_drug_enc"],
      prepped["w_drug_dec"], prepped["b_drug_dec"],
      prepped["w_cell_enc"], prepped["b_cell_enc"],
      prepped["w_cell_dec"], prepped["b_cell_dec"])

    # Slice off batch/lane padding. Reconstructions are returned in bf16 (their
    # compute precision); callers can upcast if a downstream loss needs f32.
    return final_p[:B], drec_p[:B, :Dd], crec_p[:B, :Dc]


def init_params(key, drug_dim, cell_dim, code_dim):
    """Deterministic PyTorch-Linear-style init: U(-1/sqrt(fan_in), 1/sqrt(fan_in))."""
    ks = jax.random.split(key, 8)

    def lin(k_w, k_b, fan_in, fan_out):
        bound = 1.0 / jnp.sqrt(float(fan_in))
        w = jax.random.uniform(k_w, (fan_in, fan_out), jnp.float32, -bound, bound)
        b = jax.random.uniform(k_b, (1, fan_out), jnp.float32, -bound, bound)
        return w, b

    w_de, b_de = lin(ks[0], ks[1], drug_dim, code_dim)
    w_dd, b_dd = lin(ks[2], ks[3], code_dim, drug_dim)
    w_ce, b_ce = lin(ks[4], ks[5], cell_dim, code_dim)
    w_cd, b_cd = lin(ks[6], ks[7], code_dim, cell_dim)
    return {
        "w_drug_enc": w_de, "b_drug_enc": b_de,
        "w_drug_dec": w_dd, "b_drug_dec": b_dd,
        "w_cell_enc": w_ce, "b_cell_enc": b_ce,
        "w_cell_dec": w_cd, "b_cell_dec": b_cd,
    }


def _reference(drug, cell, p):
    d_code = jnp.maximum(drug @ p["w_drug_enc"] + p["b_drug_enc"], 0.0)
    d_rec = d_code @ p["w_drug_dec"] + p["b_drug_dec"]
    c_code = jnp.maximum(cell @ p["w_cell_enc"] + p["b_cell_enc"], 0.0)
    c_rec = c_code @ p["w_cell_dec"] + p["b_cell_dec"]
    final = jnp.sum(d_code * c_code, axis=1).reshape(-1, 1)
    return final, d_rec, c_rec


if __name__ == "__main__":
    B, DRUG_DIM, CELL_DIM, CODE_DIM = 32, 64, 128, 32

    key = jax.random.PRNGKey(0)
    k_drug, k_cell, k_params = jax.random.split(key, 3)
    drug_features = jax.random.normal(k_drug, (B, DRUG_DIM), jnp.float32)
    cell_features = jax.random.normal(k_cell, (B, CELL_DIM), jnp.float32)
    params = init_params(k_params, DRUG_DIM, CELL_DIM, CODE_DIM)

    # One-time weight pad + bf16 cast (hoisted out of the forward pass).
    prepped = prepare_params(params)
    jax.block_until_ready(prepped)

    # Default tile_b=1024 is capped at half the padded batch -> tile_b=16,
    # num_tiles=2 here, exercising the same multi-step "parallel" grid path a
    # production batch would use (and splitting across v7x's two TensorCores).
    final, drug_rec, cell_rec = rec_system_forward(drug_features, cell_features, prepped)
    jax.block_until_ready((final, drug_rec, cell_rec))

    ref_final, ref_drec, ref_crec = _reference(drug_features, cell_features, params)
    assert final.shape == (B, 1)
    assert drug_rec.shape == (B, DRUG_DIM) and cell_rec.shape == (B, CELL_DIM)
    # bf16 matmul operands / bf16 reconstruction outputs (f32 accumulation)
    # -> loosened tolerance vs the f32 reference.
    assert jnp.allclose(final, ref_final, atol=5e-2, rtol=5e-2)
    assert jnp.allclose(drug_rec.astype(jnp.float32), ref_drec, atol=5e-2, rtol=5e-2)
    assert jnp.allclose(cell_rec.astype(jnp.float32), ref_crec, atol=5e-2, rtol=5e-2)

    print("KERNEL_OK")
</pallas_src>

<mosaic_0001>
module attributes {stable_mosaic.version = 11 : i64} {
  func.func @_rec_kernel(%arg0: i32, %arg1: memref<16x128xbf16, #tpu.memory_space<vmem>>, %arg2: memref<16x128xf32, #tpu.memory_space<vmem>>, %arg3: memref<128x128xbf16, #tpu.memory_space<vmem>>, %arg4: memref<1x128xf32, #tpu.memory_space<vmem>>, %arg5: memref<128x128xbf16, #tpu.memory_space<vmem>>, %arg6: memref<1x128xf32, #tpu.memory_space<vmem>>, %arg7: memref<128x128xbf16, #tpu.memory_space<vmem>>, %arg8: memref<1x128xf32, #tpu.memory_space<vmem>>, %arg9: memref<128x128xbf16, #tpu.memory_space<vmem>>, %arg10: memref<1x128xf32, #tpu.memory_space<vmem>>, %arg11: memref<16x1xf32, #tpu.memory_space<vmem>>, %arg12: memref<16x128xbf16, #tpu.memory_space<vmem>>, %arg13: memref<16x128xbf16, #tpu.memory_space<vmem>>) attributes {dimension_semantics = [#tpu.dimension_semantics<parallel>], iteration_bounds = array<i64: 2>, scalar_prefetch = 0 : i64, scratch_operands = 0 : i64, tpu.core_type = #tpu.core_type<tc>, window_params = [{transform_indices = @transform_0, window_bounds = array<i64: 16, 128>}, {transform_indices = @transform_1, window_bounds = array<i64: 16, 128>}, {pipeline_mode = #tpu.pipeline_mode<synchronous>, transform_indices = @transform_2, window_bounds = array<i64: 128, 128>}, {pipeline_mode = #tpu.pipeline_mode<synchronous>, transform_indices = @transform_3, window_bounds = array<i64: 1, 128>}, {pipeline_mode = #tpu.pipeline_mode<synchronous>, transform_indices = @transform_4, window_bounds = array<i64: 128, 128>}, {pipeline_mode = #tpu.pipeline_mode<synchronous>, transform_indices = @transform_5, window_bounds = array<i64: 1, 128>}, {pipeline_mode = #tpu.pipeline_mode<synchronous>, transform_indices = @transform_6, window_bounds = array<i64: 128, 128>}, {pipeline_mode = #tpu.pipeline_mode<synchronous>, transform_indices = @transform_7, window_bounds = array<i64: 1, 128>}, {pipeline_mode = #tpu.pipeline_mode<synchronous>, transform_indices = @transform_8, window_bounds = array<i64: 128, 128>}, {pipeline_mode = #tpu.pipeline_mode<synchronous>, transform_indices = @transform_9, window_bounds = array<i64: 1, 128>}, {transform_indices = @transform_10, window_bounds = array<i64: 16, 1>}, {transform_indices = @transform_11, window_bounds = array<i64: 16, 128>}, {transform_indices = @transform_12, window_bounds = array<i64: 16, 128>}]} {
    %c0 = arith.constant 0 : index
    %c0_0 = arith.constant 0 : index
    %0 = vector.load %arg1[%c0, %c0_0] : memref<16x128xbf16, #tpu.memory_space<vmem>>, vector<16x128xbf16>
    %c0_1 = arith.constant 0 : index
    %c0_2 = arith.constant 0 : index
    %1 = vector.load %arg2[%c0_1, %c0_2] : memref<16x128xf32, #tpu.memory_space<vmem>>, vector<16x128xf32>
    %2 = arith.truncf %1 : vector<16x128xf32> to vector<16x128xbf16>
    %c0_3 = arith.constant 0 : index
    %c0_4 = arith.constant 0 : index
    %3 = vector.load %arg3[%c0_3, %c0_4] : memref<128x128xbf16, #tpu.memory_space<vmem>>, vector<128x128xbf16>
    %cst = arith.constant dense<0.000000e+00> : vector<16x128xf32>
    %4 = tpu.matmul %0, %3, %cst {dimension_numbers = #tpu.dot_dimension_numbers<[1], [0], [0], [1], [0, 0, 1, 1], [], []>} : vector<16x128xbf16>, vector<128x128xbf16>, vector<16x128xf32> -> vector<16x128xf32>
    %c0_5 = arith.constant 0 : index
    %c0_6 = arith.constant 0 : index
    %5 = vector.load %arg4[%c0_5, %c0_6] : memref<1x128xf32, #tpu.memory_space<vmem>>, vector<1x128xf32>
    %6 = vector.broadcast %5 : vector<1x128xf32> to vector<16x128xf32>
    %7 = arith.addf %4, %6 : vector<16x128xf32>
    %cst_7 = arith.constant 0.000000e+00 : f32
    %8 = vector.broadcast %cst_7 : f32 to vector<16x128xf32>
    %9 = arith.maximumf %7, %8 : vector<16x128xf32>
    %10 = arith.truncf %9 : vector<16x128xf32> to vector<16x128xbf16>
    %c0_8 = arith.constant 0 : index
    %c0_9 = arith.constant 0 : index
    %11 = vector.load %arg5[%c0_8, %c0_9] : memref<128x128xbf16, #tpu.memory_space<vmem>>, vector<128x128xbf16>
    %cst_10 = arith.constant dense<0.000000e+00> : vector<16x128xf32>
    %12 = tpu.matmul %10, %11, %cst_10 {dimension_numbers = #tpu.dot_dimension_numbers<[1], [0], [0], [1], [0, 0, 1, 1], [], []>} : vector<16x128xbf16>, vector<128x128xbf16>, vector<16x128xf32> -> vector<16x128xf32>
    %c0_11 = arith.constant 0 : index
    %c0_12 = arith.constant 0 : index
    %13 = vector.load %arg6[%c0_11, %c0_12] : memref<1x128xf32, #tpu.memory_space<vmem>>, vector<1x128xf32>
    %14 = vector.broadcast %13 : vector<1x128xf32> to vector<16x128xf32>
    %15 = arith.addf %12, %14 : vector<16x128xf32>
    %c0_13 = arith.constant 0 : index
    %c0_14 = arith.constant 0 : index
    %16 = vector.load %arg7[%c0_13, %c0_14] : memref<128x128xbf16, #tpu.memory_space<vmem>>, vector<128x128xbf16>
    %cst_15 = arith.constant dense<0.000000e+00> : vector<16x128xf32>
    %17 = tpu.matmul %2, %16, %cst_15 {dimension_numbers = #tpu.dot_dimension_numbers<[1], [0], [0], [1], [0, 0, 1, 1], [], []>} : vector<16x128xbf16>, vector<128x128xbf16>, vector<16x128xf32> -> vector<16x128xf32>
    %c0_16 = arith.constant 0 : index
    %c0_17 = arith.constant 0 : index
    %18 = vector.load %arg8[%c0_16, %c0_17] : memref<1x128xf32, #tpu.memory_space<vmem>>, vector<1x128xf32>
    %19 = vector.broadcast %18 : vector<1x128xf32> to vector<16x128xf32>
    %20 = arith.addf %17, %19 : vector<16x128xf32>
    %cst_18 = arith.constant 0.000000e+00 : f32
    %21 = vector.broadcast %cst_18 : f32 to vector<16x128xf32>
    %22 = arith.maximumf %20, %21 : vector<16x128xf32>
    %23 = arith.truncf %22 : vector<16x128xf32> to vector<16x128xbf16>
    %c0_19 = arith.constant 0 : index
    %c0_20 = arith.constant 0 : index
    %24 = vector.load %arg9[%c0_19, %c0_20] : memref<128x128xbf16, #tpu.memory_space<vmem>>, vector<128x128xbf16>
    %cst_21 = arith.constant dense<0.000000e+00> : vector<16x128xf32>
    %25 = tpu.matmul %23, %24, %cst_21 {dimension_numbers = #tpu.dot_dimension_numbers<[1], [0], [0], [1], [0, 0, 1, 1], [], []>} : vector<16x128xbf16>, vector<128x128xbf16>, vector<16x128xf32> -> vector<16x128xf32>
    %c0_22 = arith.constant 0 : index
    %c0_23 = arith.constant 0 : index
    %26 = vector.load %arg10[%c0_22, %c0_23] : memref<1x128xf32, #tpu.memory_space<vmem>>, vector<1x128xf32>
    %27 = vector.broadcast %26 : vector<1x128xf32> to vector<16x128xf32>
    %28 = arith.addf %25, %27 : vector<16x128xf32>
    %29 = arith.mulf %9, %22 : vector<16x128xf32>
    %cst_24 = arith.constant dense<0.000000e+00> : vector<16xf32>
    %30 = vector.multi_reduction <add>, %29, %cst_24 [1] : vector<16x128xf32> to vector<16xf32>
    %31 = vector.shape_cast %30 : vector<16xf32> to vector<16x1xf32>
    %c0_25 = arith.constant 0 : index
    %c0_26 = arith.constant 0 : index
    %32 = vector.load %arg11[%c0_25, %c0_26] : memref<16x1xf32, #tpu.memory_space<vmem>>, vector<16x1xf32>
    tpu.vector_store %arg11[%c0_25, %c0_26], %31 {strides = array<i32>} : memref<16x1xf32, #tpu.memory_space<vmem>>, vector<16x1xf32>,
    %33 = arith.truncf %15 : vector<16x128xf32> to vector<16x128xbf16>
    %c0_27 = arith.constant 0 : index
    %c0_28 = arith.constant 0 : index
    %34 = vector.load %arg12[%c0_27, %c0_28] : memref<16x128xbf16, #tpu.memory_space<vmem>>, vector<16x128xbf16>
    tpu.vector_store %arg12[%c0_27, %c0_28], %33 {strides = array<i32>} : memref<16x128xbf16, #tpu.memory_space<vmem>>, vector<16x128xbf16>,
    %35 = arith.truncf %28 : vector<16x128xf32> to vector<16x128xbf16>
    %c0_29 = arith.constant 0 : index
    %c0_30 = arith.constant 0 : index
    %36 = vector.load %arg13[%c0_29, %c0_30] : memref<16x128xbf16, #tpu.memory_space<vmem>>, vector<16x128xbf16>
    tpu.vector_store %arg13[%c0_29, %c0_30], %35 {strides = array<i32>} : memref<16x128xbf16, #tpu.memory_space<vmem>>, vector<16x128xbf16>,
    return
  }
  func.func @transform_0(%arg0: i32) -> (i32, i32) {
    %c0_i32 = arith.constant 0 : i32
    %c0_i32_0 = arith.constant 0 : i32
    return %arg0, %c0_i32 : i32, i32
  }
  func.func @transform_1(%arg0: i32) -> (i32, i32) {
    %c0_i32 = arith.constant 0 : i32
    %c0_i32_0 = arith.constant 0 : i32
    return %arg0, %c0_i32 : i32, i32
  }
  func.func @transform_2(%arg0: i32) -> (i32, i32) {
    %c0_i32 = arith.constant 0 : i32
    %c0_i32_0 = arith.constant 0 : i32
    %c0_i32_1 = arith.constant 0 : i32
    return %c0_i32, %c0_i32_0 : i32, i32
  }
  func.func @transform_3(%arg0: i32) -> (i32, i32) {
    %c0_i32 = arith.constant 0 : i32
    %c0_i32_0 = arith.constant 0 : i32
    %c0_i32_1 = arith.constant 0 : i32
    return %c0_i32, %c0_i32_0 : i32, i32
  }
  func.func @transform_4(%arg0: i32) -> (i32, i32) {
    %c0_i32 = arith.constant 0 : i32
    %c0_i32_0 = arith.constant 0 : i32
    %c0_i32_1 = arith.constant 0 : i32
    return %c0_i32, %c0_i32_0 : i32, i32
  }
  func.func @transform_5(%arg0: i32) -> (i32, i32) {
    %c0_i32 = arith.constant 0 : i32
    %c0_i32_0 = arith.constant 0 : i32
    %c0_i32_1 = arith.constant 0 : i32
    return %c0_i32, %c0_i32_0 : i32, i32
  }
  func.func @transform_6(%arg0: i32) -> (i32, i32) {
    %c0_i32 = arith.constant 0 : i32
    %c0_i32_0 = arith.constant 0 : i32
    %c0_i32_1 = arith.constant 0 : i32
    return %c0_i32, %c0_i32_0 : i32, i32
  }
  func.func @transform_7(%arg0: i32) -> (i32, i32) {
    %c0_i32 = arith.constant 0 : i32
    %c0_i32_0 = arith.constant 0 : i32
    %c0_i32_1 = arith.constant 0 : i32
    return %c0_i32, %c0_i32_0 : i32, i32
  }
  func.func @transform_8(%arg0: i32) -> (i32, i32) {
    %c0_i32 = arith.constant 0 : i32
    %c0_i32_0 = arith.constant 0 : i32
    %c0_i32_1 = arith.constant 0 : i32
    return %c0_i32, %c0_i32_0 : i32, i32
  }
  func.func @transform_9(%arg0: i32) -> (i32, i32) {
    %c0_i32 = arith.constant 0 : i32
    %c0_i32_0 = arith.constant 0 : i32
    %c0_i32_1 = arith.constant 0 : i32
    return %c0_i32, %c0_i32_0 : i32, i32
  }
  func.func @transform_10(%arg0: i32) -> (i32, i32) {
    %c0_i32 = arith.constant 0 : i32
    %c0_i32_0 = arith.constant 0 : i32
    return %arg0, %c0_i32 : i32, i32
  }
  func.func @transform_11(%arg0: i32) -> (i32, i32) {
    %c0_i32 = arith.constant 0 : i32
    %c0_i32_0 = arith.constant 0 : i32
    return %arg0, %c0_i32 : i32, i32
  }
  func.func @transform_12(%arg0: i32) -> (i32, i32) {
    %c0_i32 = arith.constant 0 : i32
    %c0_i32_0 = arith.constant 0 : i32
    return %arg0, %c0_i32 : i32, i32
  }
}

</mosaic_0001>

<llo_original>
// kernel: tpu_custom_call.1
$region0: #{tpu_custom_call.1}
  #allocation0 [shape = 'u32[]', space=smem, size = 0x4, offset = 0x4, fixed_abs, tag = 'smem constant byte address 0x4 - core index']
  #allocation1 [shape = 'u32[144,128]{1,0:T(1,128)}', space=vmem, size = 0x12000, scoped, tag = 'internal scratch']
  %s0 = inlined_call_operand.hbm [shape: bf16[32,128], index: 0, kind: input, shape index: {}]
  %s1 = inlined_call_operand.hbm [shape: f32[32,128], index: 1, kind: input, shape index: {}]
  %s2 = inlined_call_operand.hbm [shape: bf16[128,128], index: 2, kind: input, shape index: {}]
  %s3 = inlined_call_operand.vmem [shape: f32[1,128], index: 3, kind: input, shape index: {}]
  %s4 = inlined_call_operand.hbm [shape: bf16[128,128], index: 4, kind: input, shape index: {}]
  %s5 = inlined_call_operand.vmem [shape: f32[1,128], index: 5, kind: input, shape index: {}]
  %s6 = inlined_call_operand.hbm [shape: bf16[128,128], index: 6, kind: input, shape index: {}]
  %s7 = inlined_call_operand.vmem [shape: f32[1,128], index: 7, kind: input, shape index: {}]
  %s8 = inlined_call_operand.hbm [shape: bf16[128,128], index: 8, kind: input, shape index: {}]
  %s9 = inlined_call_operand.vmem [shape: f32[1,128], index: 9, kind: input, shape index: {}]
  %s10 = inlined_call_operand.vmem [shape: f32[32,1], index: 10, kind: output, shape index: {0}]
  %s11 = inlined_call_operand.hbm [shape: bf16[32,128], index: 11, kind: output, shape index: {1}]
  %s12 = inlined_call_operand.hbm [shape: bf16[32,128], index: 12, kind: output, shape index: {2}]
  %13 = xla_tuple %s10, %s11, %s12
  %s14 = sld [smem:[#allocation0]]
  $region113: #{tpu_custom_call.1} parent=0
    _
  %s16 = ssub.s32 1, %s14
  %s17 = scalar_select 0, %s16, %s14
  $region1: #{tpu_custom_call.1} parent=0
    #allocation2 [shape = 'u8[8192]{0}', space=vmem, size = 0x2000, scoped, tag = 'input window, operand 0']
    #allocation3 [shape = 's32[2]{0}', space=sflag, size = 0x8, scoped, tag = 'scoped memory for tpu_custom_call.1']
    #allocation4 [shape = 's32[2]{0}', space=sflag, size = 0x8, scoped, tag = 'scoped memory for tpu_custom_call.1']
    #allocation5 [shape = 'u8[16384]{0}', space=vmem, size = 0x4000, scoped, tag = 'input window, operand 1']
    #allocation6 [shape = 's32[2]{0}', space=sflag, size = 0x8, scoped, tag = 'scoped memory for tpu_custom_call.1']
    #allocation7 [shape = 'u8[32768]{0}', space=vmem, size = 0x8000, scoped, tag = 'input window, operand 2, single buffered']
    #allocation8 [shape = 'u8[32768]{0}', space=vmem, size = 0x8000, scoped, tag = 'input window, operand 4, single buffered']
    #allocation9 [shape = 's32[1]{0}', space=sflag, size = 0x4, scoped, tag = 'scoped memory for tpu_custom_call.1']
    #allocation10 [shape = 'u8[32768]{0}', space=vmem, size = 0x8000, scoped, tag = 'input window, operand 6, single buffered']
    #allocation11 [shape = 'u8[32768]{0}', space=vmem, size = 0x8000, scoped, tag = 'input window, operand 8, single buffered']
    #allocation12 [shape = 's32[1]{0}', space=sflag, size = 0x4, scoped, tag = 'scoped memory for tpu_custom_call.1']
    #allocation13 [shape = 'u8[8192]{0}', space=vmem, size = 0x2000, scoped, tag = 'output window, operand 1']
    #allocation14 [shape = 'u8[8192]{0}', space=vmem, size = 0x2000, scoped, tag = 'output window, operand 2']
    #allocation15 [shape = 's32[2]{0}', space=sflag, size = 0x8, scoped, tag = 'scoped memory for tpu_custom_call.1']
    %18 = vsyncpa [#allocation3], 0
    %s19 = scalar_lea.sflag [#allocation3], 1
    %20 = vsyncpa %s19, 0
    %21 = vsyncpa [#allocation6], 0
    %s22 = scalar_lea.sflag [#allocation6], 1
    %23 = vsyncpa %s22, 0
    %24 = vsyncpa [#allocation9], 0
    %25 = vsyncpa [#allocation12], 0
    %26 = vsyncpa [#allocation4], 0
    %s27 = scalar_lea.sflag [#allocation4], 1
    %28 = vsyncpa %s27, 0
    %29 = vsyncpa [#allocation15], 0
    %s30 = scalar_lea.sflag [#allocation15], 1
    %31 = vsyncpa %s30, 0
    loop: start=0, step=1, limit=4
    $region2: #{tpu_custom_call.1} parent=1 // loop_pre_header
      _
    $region3: #{tpu_custom_call.1} parent=1 // loop_header
      %s33 = sphi 0, %s37
      %p34 = scmp.ge.s32.totalorder %s33, 4
      %s43 = sphi 0, %s45
      %s46 = sphi 0, %s43
      %s47 = sphi 0, %s46
      %s63 = sphi 0, %s47
      %s69 = sphi 0, %s71
      %s72 = sphi 0, %s69
      %s73 = sphi 0, %s72
      %s89 = sphi 0, %s73
      %s93 = sphi 0, %s93
      %s95 = sphi 0, %s93
      %s96 = sphi 0, %s95
      %s110 = sphi 0, %s96
      %s114 = sphi 0, %s114
      %s116 = sphi 0, %s114
      %s117 = sphi 0, %s116
      %s131 = sphi 0, %s117
      %s135 = sphi 0, %s135
      %s137 = sphi 0, %s135
      %s138 = sphi 0, %s137
      %s152 = sphi 0, %s138
      %s156 = sphi 0, %s156
      %s158 = sphi 0, %s156
      %s159 = sphi 0, %s158
      %s173 = sphi 0, %s159
      %s177 = sphi 0, %s177
      %s179 = sphi 0, %s177
      %s180 = sphi 0, %s179
      %s194 = sphi 0, %s180
      %s198 = sphi 0, %s198
      %s200 = sphi 0, %s198
      %s201 = sphi 0, %s200
      %s215 = sphi 0, %s201
      %s219 = sphi 0, %s219
      %s221 = sphi 0, %s219
      %s222 = sphi 0, %s221
      %s236 = sphi 0, %s222
      %s240 = sphi 0, %s240
      %s242 = sphi 0, %s240
      %s243 = sphi 0, %s242
      %s257 = sphi 0, %s243
      %s263 = sphi 0, %s265
      %s266 = sphi 0, %s263
      %s267 = sphi 0, %s266
      %s283 = sphi 0, %s267
      %s289 = sphi 0, %s291
      %s292 = sphi 0, %s289
      %s293 = sphi 0, %s292
      %s309 = sphi 0, %s293
      %s315 = sphi 0, %s317
      %s318 = sphi 0, %s315
      %s319 = sphi 0, %s318
      %s335 = sphi 0, %s319
    $region4: #{tpu_custom_call.1} parent=1 // loop_header_branch
      %36 = sbr.rel (%p34) target = $region8
    $region5: #{tpu_custom_call.1} parent=1 // loop_body
      %s38 = ssub.s32 %s33, 1
      %s39 = ssub.s32 %s33, 2
      %s40 = sadd.s32 %s33, 1
      %s41 = ssub.s32 %s33, %s40
      %p42 = scmp.eq.s32.totalorder %s41, 0
      %s44 = sadd.s32 %s43, 1
      %s45 = scalar_select %p42, %s43, %s44
      %p48 = pneg %p42
      %p49 = scmp.eq.s32.totalorder %s33, 1
      %p50 = por %p48, %p49
      %p51 = scmp.ne.s32.totalorder %s43, %s46
      %p52 = scmp.eq.s32.totalorder %s33, 0
      %p53 = por %p51, %p52
      %p54 = scmp.ne.s32.totalorder %s43, %s46
      %p55 = scmp.eq.s32.totalorder %s38, 1
      %p56 = por %p54, %p55
      %p57 = scmp.ne.s32.totalorder %s46, %s47
      %p58 = scmp.eq.s32.totalorder %s38, 0
      %p59 = por %p57, %p58
      %p60 = scmp.ne.s32.totalorder %s46, %s47
      %p61 = scmp.eq.s32.totalorder %s39, 1
      %p62 = por %p60, %p61
      %p64 = scmp.ne.s32.totalorder %s47, %s63
      %p65 = scmp.eq.s32.totalorder %s39, 0
      %p66 = por %p64, %p65
      %s67 = ssub.s32 %s33, %s40
      %p68 = scmp.eq.s32.totalorder %s67, 0
      %s70 = sadd.s32 %s69, 1
      %s71 = scalar_select %p68, %s69, %s70
      %p74 = pneg %p68
      %p75 = scmp.eq.s32.totalorder %s33, 1
      %p76 = por %p74, %p75
      %p77 = scmp.ne.s32.totalorder %s69, %s72
      %p78 = scmp.eq.s32.totalorder %s33, 0
      %p79 = por %p77, %p78
      %p80 = scmp.ne.s32.totalorder %s69, %s72
      %p81 = scmp.eq.s32.totalorder %s38, 1
      %p82 = por %p80, %p81
      %p83 = scmp.ne.s32.totalorder %s72, %s73
      %p84 = scmp.eq.s32.totalorder %s38, 0
      %p85 = por %p83, %p84
      %p86 = scmp.ne.s32.totalorder %s72, %s73
      %p87 = scmp.eq.s32.totalorder %s39, 1
      %p88 = por %p86, %p87
      %p90 = scmp.ne.s32.totalorder %s73, %s89
      %p91 = scmp.eq.s32.totalorder %s39, 0
      %p92 = por %p90, %p91
      %s94 = sadd.s32 %s93, 1
      %p97 = scmp.eq.s32.totalorder %s33, 1
      %p98 = scmp.ne.s32.totalorder %s93, %s95
      %p99 = scmp.eq.s32.totalorder %s33, 0
      %p100 = por %p98, %p99
      %p101 = scmp.ne.s32.totalorder %s93, %s95
      %p102 = scmp.eq.s32.totalorder %s38, 1
      %p103 = por %p101, %p102
      %p104 = scmp.ne.s32.totalorder %s95, %s96
      %p105 = scmp.eq.s32.totalorder %s38, 0
      %p106 = por %p104, %p105
      %p107 = scmp.ne.s32.totalorder %s95, %s96
      %p108 = scmp.eq.s32.totalorder %s39, 1
      %p109 = por %p107, %p108
      %p111 = scmp.ne.s32.totalorder %s96, %s110
      %p112 = scmp.eq.s32.totalorder %s39, 0
      %p113 = por %p111, %p112
      %s115 = sadd.s32 %s114, 1
      %p118 = scmp.eq.s32.totalorder %s33, 1
      %p119 = scmp.ne.s32.totalorder %s114, %s116
      %p120 = scmp.eq.s32.totalorder %s33, 0
      %p121 = por %p119, %p120
      %p122 = scmp.ne.s32.totalorder %s114, %s116
      %p123 = scmp.eq.s32.totalorder %s38, 1
      %p124 = por %p122, %p123
      %p125 = scmp.ne.s32.totalorder %s116, %s117
      %p126 = scmp.eq.s32.totalorder %s38, 0
      %p127 = por %p125, %p126
      %p128 = scmp.ne.s32.totalorder %s116, %s117
      %p129 = scmp.eq.s32.totalorder %s39, 1
      %p130 = por %p128, %p129
      %p132 = scmp.ne.s32.totalorder %s117, %s131
      %p133 = scmp.eq.s32.totalorder %s39, 0
      %p134 = por %p132, %p133
      %s136 = sadd.s32 %s135, 1
      %p139 = scmp.eq.s32.totalorder %s33, 1
      %p140 = scmp.ne.s32.totalorder %s135, %s137
      %p141 = scmp.eq.s32.totalorder %s33, 0
      %p142 = por %p140, %p141
      %p143 = scmp.ne.s32.totalorder %s135, %s137
      %p144 = scmp.eq.s32.totalorder %s38, 1
      %p145 = por %p143, %p144
      %p146 = scmp.ne.s32.totalorder %s137, %s138
      %p147 = scmp.eq.s32.totalorder %s38, 0
      %p148 = por %p146, %p147
      %p149 = scmp.ne.s32.totalorder %s137, %s138
      %p150 = scmp.eq.s32.totalorder %s39, 1
      %p151 = por %p149, %p150
      %p153 = scmp.ne.s32.totalorder %s138, %s152
      %p154 = scmp.eq.s32.totalorder %s39, 0
      %p155 = por %p153, %p154
      %s157 = sadd.s32 %s156, 1
      %p160 = scmp.eq.s32.totalorder %s33, 1
      %p161 = scmp.ne.s32.totalorder %s156, %s158
      %p162 = scmp.eq.s32.totalorder %s33, 0
      %p163 = por %p161, %p162
      %p164 = scmp.ne.s32.totalorder %s156, %s158
      %p165 = scmp.eq.s32.totalorder %s38, 1
      %p166 = por %p164, %p165
      %p167 = scmp.ne.s32.totalorder %s158, %s159
      %p168 = scmp.eq.s32.totalorder %s38, 0
      %p169 = por %p167, %p168
      %p170 = scmp.ne.s32.totalorder %s158, %s159
      %p171 = scmp.eq.s32.totalorder %s39, 1
      %p172 = por %p170, %p171
      %p174 = scmp.ne.s32.totalorder %s159, %s173
      %p175 = scmp.eq.s32.totalorder %s39, 0
      %p176 = por %p174, %p175
      %s178 = sadd.s32 %s177, 1
      %p181 = scmp.eq.s32.totalorder %s33, 1
      %p182 = scmp.ne.s32.totalorder %s177, %s179
      %p183 = scmp.eq.s32.totalorder %s33, 0
      %p184 = por %p182, %p183
      %p185 = scmp.ne.s32.totalorder %s177, %s179
      %p186 = scmp.eq.s32.totalorder %s38, 1
      %p187 = por %p185, %p186
      %p188 = scmp.ne.s32.totalorder %s179, %s180
      %p189 = scmp.eq.s32.totalorder %s38, 0
      %p190 = por %p188, %p189
      %p191 = scmp.ne.s32.totalorder %s179, %s180
      %p192 = scmp.eq.s32.totalorder %s39, 1
      %p193 = por %p191, %p192
      %p195 = scmp.ne.s32.totalorder %s180, %s194
      %p196 = scmp.eq.s32.totalorder %s39, 0
      %p197 = por %p195, %p196
      %s199 = sadd.s32 %s198, 1
      %p202 = scmp.eq.s32.totalorder %s33, 1
      %p203 = scmp.ne.s32.totalorder %s198, %s200
      %p204 = scmp.eq.s32.totalorder %s33, 0
      %p205 = por %p203, %p204
      %p206 = scmp.ne.s32.totalorder %s198, %s200
      %p207 = scmp.eq.s32.totalorder %s38, 1
      %p208 = por %p206, %p207
      %p209 = scmp.ne.s32.totalorder %s200, %s201
      %p210 = scmp.eq.s32.totalorder %s38, 0
      %p211 = por %p209, %p210
      %p212 = scmp.ne.s32.totalorder %s200, %s201
      %p213 = scmp.eq.s32.totalorder %s39, 1
      %p214 = por %p212, %p213
      %p216 = scmp.ne.s32.totalorder %s201, %s215
      %p217 = scmp.eq.s32.totalorder %s39, 0
      %p218 = por %p216, %p217
      %s220 = sadd.s32 %s219, 1
      %p223 = scmp.eq.s32.totalorder %s33, 1
      %p224 = scmp.ne.s32.totalorder %s219, %s221
      %p225 = scmp.eq.s32.totalorder %s33, 0
      %p226 = por %p224, %p225
      %p227 = scmp.ne.s32.totalorder %s219, %s221
      %p228 = scmp.eq.s32.totalorder %s38, 1
      %p229 = por %p227, %p228
      %p230 = scmp.ne.s32.totalorder %s221, %s222
      %p231 = scmp.eq.s32.totalorder %s38, 0
      %p232 = por %p230, %p231
      %p233 = scmp.ne.s32.totalorder %s221, %s222
      %p234 = scmp.eq.s32.totalorder %s39, 1
      %p235 = por %p233, %p234
      %p237 = scmp.ne.s32.totalorder %s222, %s236
      %p238 = scmp.eq.s32.totalorder %s39, 0
      %p239 = por %p237, %p238
      %s241 = sadd.s32 %s240, 1
      %p244 = scmp.eq.s32.totalorder %s33, 1
      %p245 = scmp.ne.s32.totalorder %s240, %s242
      %p246 = scmp.eq.s32.totalorder %s33, 0
      %p247 = por %p245, %p246
      %p248 = scmp.ne.s32.totalorder %s240, %s242
      %p249 = scmp.eq.s32.totalorder %s38, 1
      %p250 = por %p248, %p249
      %p251 = scmp.ne.s32.totalorder %s242, %s243
      %p252 = scmp.eq.s32.totalorder %s38, 0
      %p253 = por %p251, %p252
      %p254 = scmp.ne.s32.totalorder %s242, %s243
      %p255 = scmp.eq.s32.totalorder %s39, 1
      %p256 = por %p254, %p255
      %p258 = scmp.ne.s32.totalorder %s243, %s257
      %p259 = scmp.eq.s32.totalorder %s39, 0
      %p260 = por %p258, %p259
      %s261 = ssub.s32 %s33, %s40
      %p262 = scmp.eq.s32.totalorder %s261, 0
      %s264 = sadd.s32 %s263, 1
      %s265 = scalar_select %p262, %s263, %s264
      %p268 = pneg %p262
      %p269 = scmp.eq.s32.totalorder %s33, 1
      %p270 = por %p268, %p269
      %p271 = scmp.ne.s32.totalorder %s263, %s266
      %p272 = scmp.eq.s32.totalorder %s33, 0
      %p273 = por %p271, %p272
      %p274 = scmp.ne.s32.totalorder %s263, %s266
      %p275 = scmp.eq.s32.totalorder %s38, 1
      %p276 = por %p274, %p275
      %p277 = scmp.ne.s32.totalorder %s266, %s267
      %p278 = scmp.eq.s32.totalorder %s38, 0
      %p279 = por %p277, %p278
      %p280 = scmp.ne.s32.totalorder %s266, %s267
      %p281 = scmp.eq.s32.totalorder %s39, 1
      %p282 = por %p280, %p281
      %p284 = scmp.ne.s32.totalorder %s267, %s283
      %p285 = scmp.eq.s32.totalorder %s39, 0
      %p286 = por %p284, %p285
      %s287 = ssub.s32 %s33, %s40
      %p288 = scmp.eq.s32.totalorder %s287, 0
      %s290 = sadd.s32 %s289, 1
      %s291 = scalar_select %p288, %s289, %s290
      %p294 = pneg %p288
      %p295 = scmp.eq.s32.totalorder %s33, 1
      %p296 = por %p294, %p295
      %p297 = scmp.ne.s32.totalorder %s289, %s292
      %p298 = scmp.eq.s32.totalorder %s33, 0
      %p299 = por %p297, %p298
      %p300 = scmp.ne.s32.totalorder %s289, %s292
      %p301 = scmp.eq.s32.totalorder %s38, 1
      %p302 = por %p300, %p301
      %p303 = scmp.ne.s32.totalorder %s292, %s293
      %p304 = scmp.eq.s32.totalorder %s38, 0
      %p305 = por %p303, %p304
      %p306 = scmp.ne.s32.totalorder %s292, %s293
      %p307 = scmp.eq.s32.totalorder %s39, 1
      %p308 = por %p306, %p307
      %p310 = scmp.ne.s32.totalorder %s293, %s309
      %p311 = scmp.eq.s32.totalorder %s39, 0
      %p312 = por %p310, %p311
      %s313 = ssub.s32 %s33, %s40
      %p314 = scmp.eq.s32.totalorder %s313, 0
      %s316 = sadd.s32 %s315, 1
      %s317 = scalar_select %p314, %s315, %s316
      %p320 = pneg %p314
      %p321 = scmp.eq.s32.totalorder %s33, 1
      %p322 = por %p320, %p321
      %p323 = scmp.ne.s32.totalorder %s315, %s318
      %p324 = scmp.eq.s32.totalorder %s33, 0
      %p325 = por %p323, %p324
      %p326 = scmp.ne.s32.totalorder %s315, %s318
      %p327 = scmp.eq.s32.totalorder %s38, 1
      %p328 = por %p326, %p327
      %p329 = scmp.ne.s32.totalorder %s318, %s319
      %p330 = scmp.eq.s32.totalorder %s38, 0
      %p331 = por %p329, %p330
      %p332 = scmp.ne.s32.totalorder %s318, %s319
      %p333 = scmp.eq.s32.totalorder %s39, 1
      %p334 = por %p332, %p333
      %p336 = scmp.ne.s32.totalorder %s319, %s335
      %p337 = scmp.eq.s32.totalorder %s39, 0
      %p338 = por %p336, %p337
      %p339 = scmp.le.s32.totalorder 1, %s33
      %p340 = scmp.lt.s32.totalorder %s33, 3
      %p341 = pnand %p339, %p340
      %p342 = pneg %p341
      // Predicated region
      $region9: #{tpu_custom_call.1} parent=5 // pred_check
        _
      $region10: #{tpu_custom_call.1} parent=5 // pred_check_branch
        %344 = sbr.rel (%p341) target = $region12
      $region11: #{tpu_custom_call.1} parent=5 // pred_region
        %s345 = ssub.s32 %s33, 1
        // Predicated region
        $region13: #{tpu_custom_call.1} parent=11 // pred_check
          %p346 = pneg %p106
        $region14: #{tpu_custom_call.1} parent=11 // pred_check_branch
          %348 = sbr.rel (%p346) target = $region16
        $region15: #{tpu_custom_call.1} parent=11 // pred_region
          %s350 = ssub.s32 1024, 1024
          %351 = vsyncadd [#allocation6], %s350
          %s352 = sshll.u32 [#allocation7], 4
          %s353 = int_to_ptr.vmem [resolvable:$true] %s352
          %358 = dma.hbm_to_vmem [thread:$0]  %s2, 1024, %s353, [#allocation6], 64, 64, 4
        $region16: #{tpu_custom_call.1} parent=11 // pred_fallthru
          _
        // Predicated region
        $region17: #{tpu_custom_call.1} parent=11 // pred_check
          %p359 = pneg %p127
        $region18: #{tpu_custom_call.1} parent=11 // pred_check_branch
          %361 = sbr.rel (%p359) target = $region20
        $region19: #{tpu_custom_call.1} parent=11 // pred_region
          _
        $region20: #{tpu_custom_call.1} parent=11 // pred_fallthru
          _
        // Predicated region
        $region21: #{tpu_custom_call.1} parent=11 // pred_check
          %p362 = pneg %p148
        $region22: #{tpu_custom_call.1} parent=11 // pred_check_branch
          %364 = sbr.rel (%p362) target = $region24
        $region23: #{tpu_custom_call.1} parent=11 // pred_region
          %s366 = ssub.s32 1024, 1024
          %367 = vsyncadd [#allocation9], %s366
          %s368 = sshll.u32 [#allocation8], 4
          %s369 = int_to_ptr.vmem [resolvable:$true] %s368
          %374 = dma.hbm_to_vmem [thread:$0]  %s4, 1024, %s369, [#allocation9], 64, 64, 4
        $region24: #{tpu_custom_call.1} parent=11 // pred_fallthru
          _
        // Predicated region
        $region25: #{tpu_custom_call.1} parent=11 // pred_check
          %p375 = pneg %p169
        $region26: #{tpu_custom_call.1} parent=11 // pred_check_branch
          %377 = sbr.rel (%p375) target = $region28
        $region27: #{tpu_custom_call.1} parent=11 // pred_region
          _
        $region28: #{tpu_custom_call.1} parent=11 // pred_fallthru
          _
        // Predicated region
        $region29: #{tpu_custom_call.1} parent=11 // pred_check
          %p378 = pneg %p190
        $region30: #{tpu_custom_call.1} parent=11 // pred_check_branch
          %380 = sbr.rel (%p378) target = $region32
        $region31: #{tpu_custom_call.1} parent=11 // pred_region
          %s382 = ssub.s32 1024, 1024
          %383 = vsyncadd [#allocation9], %s382
          %s384 = sshll.u32 [#allocation10], 4
          %s385 = int_to_ptr.vmem [resolvable:$true] %s384
          %390 = dma.hbm_to_vmem [thread:$0]  %s6, 1024, %s385, [#allocation9], 64, 64, 4
        $region32: #{tpu_custom_call.1} parent=11 // pred_fallthru
          _
        // Predicated region
        $region33: #{tpu_custom_call.1} parent=11 // pred_check
          %p391 = pneg %p211
        $region34: #{tpu_custom_call.1} parent=11 // pred_check_branch
          %393 = sbr.rel (%p391) target = $region36
        $region35: #{tpu_custom_call.1} parent=11 // pred_region
          _
        $region36: #{tpu_custom_call.1} parent=11 // pred_fallthru
          _
        // Predicated region
        $region37: #{tpu_custom_call.1} parent=11 // pred_check
          %p394 = pneg %p232
        $region38: #{tpu_custom_call.1} parent=11 // pred_check_branch
          %396 = sbr.rel (%p394) target = $region40
        $region39: #{tpu_custom_call.1} parent=11 // pred_region
          %s398 = ssub.s32 1024, 1024
          %399 = vsyncadd [#allocation12], %s398
          %s400 = sshll.u32 [#allocation11], 4
          %s401 = int_to_ptr.vmem [resolvable:$true] %s400
          %406 = dma.hbm_to_vmem [thread:$0]  %s8, 1024, %s401, [#allocation12], 64, 64, 4
        $region40: #{tpu_custom_call.1} parent=11 // pred_fallthru
          _
        // Predicated region
        $region41: #{tpu_custom_call.1} parent=11 // pred_check
          %p407 = pneg %p253
        $region42: #{tpu_custom_call.1} parent=11 // pred_check_branch
          %409 = sbr.rel (%p407) target = $region44
        $region43: #{tpu_custom_call.1} parent=11 // pred_region
          _
        $region44: #{tpu_custom_call.1} parent=11 // pred_fallthru
          _
      $region12: #{tpu_custom_call.1} parent=5 // pred_fallthru
        _
      %p410 = scmp.lt.s32.totalorder %s33, 2
      // Predicated region
      $region45: #{tpu_custom_call.1} parent=5 // pred_check
        %p411 = pneg %p410
      $region46: #{tpu_custom_call.1} parent=5 // pred_check_branch
        %413 = sbr.rel (%p411) target = $region48
      $region47: #{tpu_custom_call.1} parent=5 // pred_region
        // Predicated region
        $region49: #{tpu_custom_call.1} parent=47 // pred_check
          %p414 = pneg %p53
        $region50: #{tpu_custom_call.1} parent=47 // pred_check_branch
          %416 = sbr.rel (%p414) target = $region52
        $region51: #{tpu_custom_call.1} parent=47 // pred_region
          %s417 = sand.u32 %s43, 1
          %s418 = scalar_lea.sflag [#allocation3], %s417
          %s419 = sand.u32 %s43, 1
          %s420 = smul.addr %s419, 8
          %s421 = scalar_lea.vmem [#allocation2], %s420
          %s422 = smul.u32 2, %s33
          %s424 = ssub.s32 128, 128
          %425 = vsyncadd %s418, %s424
          %s426 = smul.addr %s422, 64
          %s427 = scalar_lea.hbm %s0, %s426
          %s428 = sshll.u32 %s421, 4
          %s429 = int_to_ptr.vmem [resolvable:$true] %s428
          %434 = dma.hbm_to_vmem [thread:$0]  %s427, 128, %s429, %s418, 64, 64, 4
        $region52: #{tpu_custom_call.1} parent=47 // pred_fallthru
          _
        // Predicated region
        $region53: #{tpu_custom_call.1} parent=47 // pred_check
          %p435 = pneg %p79
        $region54: #{tpu_custom_call.1} parent=47 // pred_check_branch
          %437 = sbr.rel (%p435) target = $region56
        $region55: #{tpu_custom_call.1} parent=47 // pred_region
          %s438 = sand.u32 %s33, 1
          %s439 = scalar_lea.sflag [#allocation6], %s438
          %s440 = sand.u32 %s69, 1
          %s441 = smul.addr %s440, 16
          %s442 = scalar_lea.vmem [#allocation5], %s441
          %s443 = smul.u32 2, %s33
          %s445 = ssub.s32 256, 256
          %446 = vsyncadd %s439, %s445
          %s447 = smul.addr %s443, 128
          %s448 = scalar_lea.hbm %s1, %s447
          %s449 = sshll.u32 %s442, 4
          %s450 = int_to_ptr.vmem [resolvable:$true] %s449
          %455 = dma.hbm_to_vmem [thread:$0]  %s448, 256, %s450, %s439, 128, 128, 8
        $region56: #{tpu_custom_call.1} parent=47 // pred_fallthru
          _
      $region48: #{tpu_custom_call.1} parent=5 // pred_fallthru
        _
      %p456 = scmp.le.s32.totalorder 1, %s33
      %p457 = scmp.lt.s32.totalorder %s33, 3
      %p458 = pnand %p456, %p457
      %p459 = pneg %p458
      // Predicated region
      $region57: #{tpu_custom_call.1} parent=5 // pred_check
        _
      $region58: #{tpu_custom_call.1} parent=5 // pred_check_branch
        %461 = sbr.rel (%p458) target = $region60
      $region59: #{tpu_custom_call.1} parent=5 // pred_region
        %s462 = ssub.s32 %s33, 1
        %s463 = sand.u32 %s46, 1
        %s464 = scalar_lea.sflag [#allocation3], %s463
        %s465 = sand.u32 %s46, 1
        %s466 = smul.addr %s465, 8
        %s467 = scalar_lea.vmem [#allocation2], %s466
        // Predicated region
        $region61: #{tpu_custom_call.1} parent=59 // pred_check
          %p468 = pneg %p59
        $region62: #{tpu_custom_call.1} parent=59 // pred_check_branch
          %470 = sbr.rel (%p468) target = $region64
        $region63: #{tpu_custom_call.1} parent=59 // pred_region
          %471 = dma.done %s464, 128
        $region64: #{tpu_custom_call.1} parent=59 // pred_fallthru
          _
        %s472 = sand.u32 %s38, 1
        %s473 = scalar_lea.sflag [#allocation6], %s472
        %s474 = sand.u32 %s72, 1
        %s475 = smul.addr %s474, 16
        %s476 = scalar_lea.vmem [#allocation5], %s475
        // Predicated region
        $region65: #{tpu_custom_call.1} parent=59 // pred_check
          %p477 = pneg %p85
        $region66: #{tpu_custom_call.1} parent=59 // pred_check_branch
          %479 = sbr.rel (%p477) target = $region68
        $region67: #{tpu_custom_call.1} parent=59 // pred_region
          %480 = dma.done %s473, 256
        $region68: #{tpu_custom_call.1} parent=59 // pred_fallthru
          _
        // Predicated region
        $region69: #{tpu_custom_call.1} parent=59 // pred_check
          %p481 = pneg %p106
        $region70: #{tpu_custom_call.1} parent=59 // pred_check_branch
          %483 = sbr.rel (%p481) target = $region72
        $region71: #{tpu_custom_call.1} parent=59 // pred_region
          %484 = dma.done [#allocation6], 1024
        $region72: #{tpu_custom_call.1} parent=59 // pred_fallthru
          _
        // Predicated region
        $region73: #{tpu_custom_call.1} parent=59 // pred_check
          %p485 = pneg %p148
        $region74: #{tpu_custom_call.1} parent=59 // pred_check_branch
          %487 = sbr.rel (%p485) target = $region76
        $region75: #{tpu_custom_call.1} parent=59 // pred_region
          %488 = dma.done [#allocation9], 1024
        $region76: #{tpu_custom_call.1} parent=59 // pred_fallthru
          _
        // Predicated region
        $region77: #{tpu_custom_call.1} parent=59 // pred_check
          %p489 = pneg %p190
        $region78: #{tpu_custom_call.1} parent=59 // pred_check_branch
          %491 = sbr.rel (%p489) target = $region80
        $region79: #{tpu_custom_call.1} parent=59 // pred_region
          %492 = dma.done [#allocation9], 1024
        $region80: #{tpu_custom_call.1} parent=59 // pred_fallthru
          _
        // Predicated region
        $region81: #{tpu_custom_call.1} parent=59 // pred_check
          %p493 = pneg %p232
        $region82: #{tpu_custom_call.1} parent=59 // pred_check_branch
          %495 = sbr.rel (%p493) target = $region84
        $region83: #{tpu_custom_call.1} parent=59 // pred_region
          %496 = dma.done [#allocation12], 1024
        $region84: #{tpu_custom_call.1} parent=59 // pred_fallthru
          _
        %s497 = sand.u32 %s46, 1
        %s498 = scalar_lea.sflag [#allocation3], %s497
        %s499 = sand.u32 %s46, 1
        %s500 = smul.addr %s499, 8
        %s501 = scalar_lea.vmem [#allocation2], %s500
        %p502 = pneg %p59
        %p503 = pneg %p56
        %s504 = sand.u32 %s38, 1
        %s505 = scalar_lea.sflag [#allocation6], %s504
        %s506 = sand.u32 %s72, 1
        %s507 = smul.addr %s506, 16
        %s508 = scalar_lea.vmem [#allocation5], %s507
        %p509 = pneg %p85
        %p510 = pneg %p82
        %p511 = pneg %p106
        %p512 = pneg %p103
        %p513 = pneg %p127
        %p514 = pneg %p124
        %p515 = pneg %p148
        %p516 = pneg %p145
        %p517 = pneg %p169
        %p518 = pneg %p166
        %p519 = pneg %p190
        %p520 = pneg %p187
        %p521 = pneg %p211
        %p522 = pneg %p208
        %p523 = pneg %p232
        %p524 = pneg %p229
        %p525 = pneg %p253
        %p526 = pneg %p250
        %p527 = pneg %p279
        %p528 = pneg %p276
        %s529 = smul.u32 2, %s38
        %p530 = scmp.lt.s32.totalorder %s529, 3
        %s531 = scalar_select %p530, %s529, 3
        %s532 = smul.addr %s531, 8
        %s533 = scalar_lea.vmem %s10, %s532
        %p534 = pneg %p305
        %p535 = pneg %p302
        %s536 = sand.u32 %s292, 1
        %s537 = scalar_lea.sflag [#allocation4], %s536
        %s538 = sand.u32 %s292, 1
        %s539 = smul.addr %s538, 8
        %s540 = scalar_lea.vmem [#allocation13], %s539
        %p541 = pneg %p331
        %p542 = pneg %p328
        %s543 = sand.u32 %s318, 1
        %s544 = scalar_lea.sflag [#allocation15], %s543
        %s545 = sand.u32 %s318, 1
        %s546 = smul.addr %s545, 8
        %s547 = scalar_lea.vmem [#allocation14], %s546
        %s548 = smul.u32 2, %s38
        %s549 = smul.u32 2, %s38
        %s550 = smul.u32 2, %s38
        %p551 = scmp.lt.s32.totalorder %s550, 3
        %s552 = scalar_select %p551, %s550, 3
        %s553 = smul.addr %s552, 8
        %s554 = scalar_lea.vmem %s10, %s553
        %s555 = smul.u32 2, %s38
        %s556 = smul.u32 2, %s38
        %s557 = smul.u32 2, %s38
        %v559 = vld [vmem:[%s467] sm:$0xf]
        %v560 = vld [vmem:[%s467 + $0x4] sm:$0xf]
        %v561 = vld [vmem:[%s476] sm:$0xff]
        %v562 = vld [vmem:[%s476 + $0x8] sm:$0xff]
        %v563 = vpack.c.bf16 %v562, %v561
        %v564 = vld [vmem:[#allocation7] sm:$0xf]
        %v565 = vld [vmem:[#allocation7 + $0x4] sm:$0xf]
        %v566 = vld [vmem:[#allocation7 + $0x8] sm:$0xf]
        %v567 = vld [vmem:[#allocation7 + $0xc] sm:$0xf]
        %v568 = vld [vmem:[#allocation7 + $0x10] sm:$0xf]
        %v569 = vld [vmem:[#allocation7 + $0x14] sm:$0xf]
        %v570 = vld [vmem:[#allocation7 + $0x18] sm:$0xf]
        %v571 = vld [vmem:[#allocation7 + $0x1c] sm:$0xf]
        %v572 = vld [vmem:[#allocation7 + $0x20] sm:$0xf]
        %v573 = vld [vmem:[#allocation7 + $0x24] sm:$0xf]
        %v574 = vld [vmem:[#allocation7 + $0x28] sm:$0xf]
        %v575 = vld [vmem:[#allocation7 + $0x2c] sm:$0xf]
        %v576 = vld [vmem:[#allocation7 + $0x30] sm:$0xf]
        %v577 = vld [vmem:[#allocation7 + $0x34] sm:$0xf]
        %v578 = vld [vmem:[#allocation7 + $0x38] sm:$0xf]
        %v579 = vld [vmem:[#allocation7 + $0x3c] sm:$0xf]
        %v580 = vld [vmem:[%s3] sm:$0x1]
        %v582 = vlaneseq
        %v583 = vshrl.u32 %v582, 7
        %v584 = vsub.s32 0, %v583
        %v585 = vrot.slane %v580, %v584
        %v589 = vunpack.c.l.b16 %v559
        %v590 = vunpack.c.l.b16 %v560
        %v591 = vpack.c.b16 %v590, %v589
        %v609 = vunpack.c.l.b16 %v564
        %v610 = vunpack.c.l.b16 %v565
        %v611 = vunpack.c.l.b16 %v566
        %v612 = vunpack.c.l.b16 %v567
        %v613 = vunpack.c.l.b16 %v568
        %v614 = vunpack.c.l.b16 %v569
        %v615 = vunpack.c.l.b16 %v570
        %v616 = vunpack.c.l.b16 %v571
        %v617 = vunpack.c.l.b16 %v572
        %v618 = vunpack.c.l.b16 %v573
        %v619 = vunpack.c.l.b16 %v574
        %v620 = vunpack.c.l.b16 %v575
        %v621 = vunpack.c.l.b16 %v576
        %v622 = vunpack.c.l.b16 %v577
        %v623 = vunpack.c.l.b16 %v578
        %v624 = vunpack.c.l.b16 %v579
        %v625 = vpack.c.b16 %v610, %v609
        %v626 = vpack.c.b16 %v612, %v611
        %v627 = vpack.c.b16 %v614, %v613
        %v628 = vpack.c.b16 %v616, %v615
        %v629 = vpack.c.b16 %v618, %v617
        %v630 = vpack.c.b16 %v620, %v619
        %v631 = vpack.c.b16 %v622, %v621
        %v632 = vpack.c.b16 %v624, %v623
        %641 = vmatprep.subr.bf16.mxu0 0
        %642 = vmatpush1.bf16.msra.mxu0 %v625
        %643 = vmatprep.subr.bf16.mxu0 0
        %644 = vmatpush1.bf16.msra.mxu0 %v626
        %645 = vmatprep.subr.bf16.mxu0 0
        %646 = vmatpush1.bf16.msra.mxu0 %v627
        %647 = vmatprep.subr.bf16.mxu0 0
        %648 = vmatpush1.bf16.msra.mxu0 %v628
        %649 = vmatprep.subr.bf16.mxu0 0
        %650 = vmatpush1.bf16.msra.mxu0 %v629
        %651 = vmatprep.subr.bf16.mxu0 0
        %652 = vmatpush1.bf16.msra.mxu0 %v630
        %653 = vmatprep.subr.bf16.mxu0 0
        %654 = vmatpush1.bf16.msra.mxu0 %v631
        %655 = vmatprep.subr.bf16.mxu0 0
        %656 = vmatpush1.bf16.msra.mxu0 %v632
        %657 = vmatprep.subr.bf16.mxu0 0
        %658 = vmatpush1.bf16.msra.mxu0 0
        %659 = vmatprep.subr.bf16.mxu0 0
        %660 = vmatpush1.bf16.msra.mxu0 0
        %661 = vmatprep.subr.bf16.mxu0 0
        %662 = vmatpush1.bf16.msra.mxu0 0
        %663 = vmatprep.subr.bf16.mxu0 0
        %664 = vmatpush1.bf16.msra.mxu0 0
        %665 = vmatprep.subr.bf16.mxu0 0
        %666 = vmatpush1.bf16.msra.mxu0 0
        %667 = vmatprep.subr.bf16.mxu0 0
        %668 = vmatpush1.bf16.msra.mxu0 0
        %669 = vmatprep.subr.bf16.mxu0 0
        %670 = vmatpush1.bf16.msra.mxu0 0
        %671 = vmatprep.subr.bf16.mxu0 0
        %672 = vmatpush1.bf16.msra.mxu0 0
        %673 = vmatprep.mubr.bf16.mxu0 0
        %674 = vmatmul.mubr.bf16.gmra.mrb[0].mxu0 %v591
        %v675 = vpop.f32.mrb[0].mxu0
        %v676 = vadd.f32 %v585, %v675
        %v677 = vpop.f32.mrb[0].mxu0
        %v678 = vpop.f32.mrb[0].mxu0
        %v679 = vadd.f32 %v585, %v678
        %v680 = vpop.f32.mrb[0].mxu0
        %681 = vdwg.mxu0
        %v682 = vmax.f32 %v676, 0.0
        %v683 = vmax.f32 %v679, 0.0
        %v684 = vpack.c.bf16 %v683, %v682
        %v685 = vld [vmem:[#allocation8] sm:$0xf]
        %v686 = vld [vmem:[#allocation8 + $0x4] sm:$0xf]
        %v687 = vld [vmem:[#allocation8 + $0x8] sm:$0xf]
        %v688 = vld [vmem:[#allocation8 + $0xc] sm:$0xf]
        %v689 = vld [vmem:[#allocation8 + $0x10] sm:$0xf]
        %v690 = vld [vmem:[#allocation8 + $0x14] sm:$0xf]
        %v691 = vld [vmem:[#allocation8 + $0x18] sm:$0xf]
        %v692 = vld [vmem:[#allocation8 + $0x1c] sm:$0xf]
        %v693 = vld [vmem:[#allocation8 + $0x20] sm:$0xf]
        %v694 = vld [vmem:[#allocation8 + $0x24] sm:$0xf]
        %v695 = vld [vmem:[#allocation8 + $0x28] sm:$0xf]
        %v696 = vld [vmem:[#allocation8 + $0x2c] sm:$0xf]
        %v697 = vld [vmem:[#allocation8 + $0x30] sm:$0xf]
        %v698 = vld [vmem:[#allocation8 + $0x34] sm:$0xf]
        %v699 = vld [vmem:[#allocation8 + $0x38] sm:$0xf]
        %v700 = vld [vmem:[#allocation8 + $0x3c] sm:$0xf]
        %v701 = vld [vmem:[%s5] sm:$0x1]
        %v703 = vlaneseq
        %v704 = vshrl.u32 %v703, 7
        %v705 = vsub.s32 0, %v704
        %v706 = vrot.slane %v701, %v705
        %v724 = vunpack.c.l.b16 %v685
        %v725 = vunpack.c.l.b16 %v686
        %v726 = vunpack.c.l.b16 %v687
        %v727 = vunpack.c.l.b16 %v688
        %v728 = vunpack.c.l.b16 %v689
        %v729 = vunpack.c.l.b16 %v690
        %v730 = vunpack.c.l.b16 %v691
        %v731 = vunpack.c.l.b16 %v692
        %v732 = vunpack.c.l.b16 %v693
        %v733 = vunpack.c.l.b16 %v694
        %v734 = vunpack.c.l.b16 %v695
        %v735 = vunpack.c.l.b16 %v696
        %v736 = vunpack.c.l.b16 %v697
        %v737 = vunpack.c.l.b16 %v698
        %v738 = vunpack.c.l.b16 %v699
        %v739 = vunpack.c.l.b16 %v700
        %v740 = vpack.c.b16 %v725, %v724
        %v741 = vpack.c.b16 %v727, %v726
        %v742 = vpack.c.b16 %v729, %v728
        %v743 = vpack.c.b16 %v731, %v730
        %v744 = vpack.c.b16 %v733, %v732
        %v745 = vpack.c.b16 %v735, %v734
        %v746 = vpack.c.b16 %v737, %v736
        %v747 = vpack.c.b16 %v739, %v738
        %756 = vmatprep.subr.bf16.mxu0 0
        %757 = vmatpush1.bf16.msra.mxu0 %v740
        %758 = vmatprep.subr.bf16.mxu0 0
        %759 = vmatpush1.bf16.msra.mxu0 %v741
        %760 = vmatprep.subr.bf16.mxu0 0
        %761 = vmatpush1.bf16.msra.mxu0 %v742
        %762 = vmatprep.subr.bf16.mxu0 0
        %763 = vmatpush1.bf16.msra.mxu0 %v743
        %764 = vmatprep.subr.bf16.mxu0 0
        %765 = vmatpush1.bf16.msra.mxu0 %v744
        %766 = vmatprep.subr.bf16.mxu0 0
        %767 = vmatpush1.bf16.msra.mxu0 %v745
        %768 = vmatprep.subr.bf16.mxu0 0
        %769 = vmatpush1.bf16.msra.mxu0 %v746
        %770 = vmatprep.subr.bf16.mxu0 0
        %771 = vmatpush1.bf16.msra.mxu0 %v747
        %772 = vmatprep.subr.bf16.mxu0 0
        %773 = vmatpush1.bf16.msra.mxu0 0
        %774 = vmatprep.subr.bf16.mxu0 0
        %775 = vmatpush1.bf16.msra.mxu0 0
        %776 = vmatprep.subr.bf16.mxu0 0
        %777 = vmatpush1.bf16.msra.mxu0 0
        %778 = vmatprep.subr.bf16.mxu0 0
        %779 = vmatpush1.bf16.msra.mxu0 0
        %780 = vmatprep.subr.bf16.mxu0 0
        %781 = vmatpush1.bf16.msra.mxu0 0
        %782 = vmatprep.subr.bf16.mxu0 0
        %783 = vmatpush1.bf16.msra.mxu0 0
        %784 = vmatprep.subr.bf16.mxu0 0
        %785 = vmatpush1.bf16.msra.mxu0 0
        %786 = vmatprep.subr.bf16.mxu0 0
        %787 = vmatpush1.bf16.msra.mxu0 0
        %788 = vmatprep.mubr.bf16.mxu0 0
        %789 = vmatmul.mubr.bf16.gmra.mrb[0].mxu0 %v684
        %v790 = vpop.f32.mrb[0].mxu0
        %v791 = vadd.f32 %v706, %v790
        %v792 = vpop.f32.mrb[0].mxu0
        %v793 = vpop.f32.mrb[0].mxu0
        %v794 = vadd.f32 %v706, %v793
        %v795 = vpop.f32.mrb[0].mxu0
        %796 = vdwg.mxu0
        %v797 = vld [vmem:[#allocation10] sm:$0xf]
        %v798 = vld [vmem:[#allocation10 + $0x4] sm:$0xf]
        %v799 = vld [vmem:[#allocation10 + $0x8] sm:$0xf]
        %v800 = vld [vmem:[#allocation10 + $0xc] sm:$0xf]
        %v801 = vld [vmem:[#allocation10 + $0x10] sm:$0xf]
        %v802 = vld [vmem:[#allocation10 + $0x14] sm:$0xf]
        %v803 = vld [vmem:[#allocation10 + $0x18] sm:$0xf]
        %v804 = vld [vmem:[#allocation10 + $0x1c] sm:$0xf]
        %v805 = vld [vmem:[#allocation10 + $0x20] sm:$0xf]
        %v806 = vld [vmem:[#allocation10 + $0x24] sm:$0xf]
        %v807 = vld [vmem:[#allocation10 + $0x28] sm:$0xf]
        %v808 = vld [vmem:[#allocation10 + $0x2c] sm:$0xf]
        %v809 = vld [vmem:[#allocation10 + $0x30] sm:$0xf]
        %v810 = vld [vmem:[#allocation10 + $0x34] sm:$0xf]
        %v811 = vld [vmem:[#allocation10 + $0x38] sm:$0xf]
        %v812 = vld [vmem:[#allocation10 + $0x3c] sm:$0xf]
        %v813 = vld [vmem:[%s7] sm:$0x1]
        %v815 = vlaneseq
        %v816 = vshrl.u32 %v815, 7
        %v817 = vsub.s32 0, %v816
        %v818 = vrot.slane %v813, %v817
        %v836 = vunpack.c.l.b16 %v797
        %v837 = vunpack.c.l.b16 %v798
        %v838 = vunpack.c.l.b16 %v799
        %v839 = vunpack.c.l.b16 %v800
        %v840 = vunpack.c.l.b16 %v801
        %v841 = vunpack.c.l.b16 %v802
        %v842 = vunpack.c.l.b16 %v803
        %v843 = vunpack.c.l.b16 %v804
        %v844 = vunpack.c.l.b16 %v805
        %v845 = vunpack.c.l.b16 %v806
        %v846 = vunpack.c.l.b16 %v807
        %v847 = vunpack.c.l.b16 %v808
        %v848 = vunpack.c.l.b16 %v809
        %v849 = vunpack.c.l.b16 %v810
        %v850 = vunpack.c.l.b16 %v811
        %v851 = vunpack.c.l.b16 %v812
        %v852 = vpack.c.b16 %v837, %v836
        %v853 = vpack.c.b16 %v839, %v838
        %v854 = vpack.c.b16 %v841, %v840
        %v855 = vpack.c.b16 %v843, %v842
        %v856 = vpack.c.b16 %v845, %v844
        %v857 = vpack.c.b16 %v847, %v846
        %v858 = vpack.c.b16 %v849, %v848
        %v859 = vpack.c.b16 %v851, %v850
        %868 = vmatprep.subr.bf16.mxu0 0
        %869 = vmatpush1.bf16.msra.mxu0 %v852
        %870 = vmatprep.subr.bf16.mxu0 0
        %871 = vmatpush1.bf16.msra.mxu0 %v853
        %872 = vmatprep.subr.bf16.mxu0 0
        %873 = vmatpush1.bf16.msra.mxu0 %v854
        %874 = vmatprep.subr.bf16.mxu0 0
        %875 = vmatpush1.bf16.msra.mxu0 %v855
        %876 = vmatprep.subr.bf16.mxu0 0
        %877 = vmatpush1.bf16.msra.mxu0 %v856
        %878 = vmatprep.subr.bf16.mxu0 0
        %879 = vmatpush1.bf16.msra.mxu0 %v857
        %880 = vmatprep.subr.bf16.mxu0 0
        %881 = vmatpush1.bf16.msra.mxu0 %v858
        %882 = vmatprep.subr.bf16.mxu0 0
        %883 = vmatpush1.bf16.msra.mxu0 %v859
        %884 = vmatprep.subr.bf16.mxu0 0
        %885 = vmatpush1.bf16.msra.mxu0 0
        %886 = vmatprep.subr.bf16.mxu0 0
        %887 = vmatpush1.bf16.msra.mxu0 0
        %888 = vmatprep.subr.bf16.mxu0 0
        %889 = vmatpush1.bf16.msra.mxu0 0
        %890 = vmatprep.subr.bf16.mxu0 0
        %891 = vmatpush1.bf16.msra.mxu0 0
        %892 = vmatprep.subr.bf16.mxu0 0
        %893 = vmatpush1.bf16.msra.mxu0 0
        %894 = vmatprep.subr.bf16.mxu0 0
        %895 = vmatpush1.bf16.msra.mxu0 0
        %896 = vmatprep.subr.bf16.mxu0 0
        %897 = vmatpush1.bf16.msra.mxu0 0
        %898 = vmatprep.subr.bf16.mxu0 0
        %899 = vmatpush1.bf16.msra.mxu0 0
        %900 = vmatprep.mubr.bf16.mxu0 0
        %901 = vmatmul.mubr.bf16.gmra.mrb[0].mxu0 %v563
        %v902 = vpop.f32.mrb[0].mxu0
        %v903 = vadd.f32 %v818, %v902
        %v904 = vpop.f32.mrb[0].mxu0
        %v905 = vpop.f32.mrb[0].mxu0
        %v906 = vadd.f32 %v818, %v905
        %v907 = vpop.f32.mrb[0].mxu0
        %908 = vdwg.mxu0
        %v909 = vmax.f32 %v903, 0.0
        %v910 = vmax.f32 %v906, 0.0
        %v911 = vpack.c.bf16 %v910, %v909
        %v912 = vld [vmem:[#allocation11] sm:$0xf]
        %v913 = vld [vmem:[#allocation11 + $0x4] sm:$0xf]
        %v914 = vld [vmem:[#allocation11 + $0x8] sm:$0xf]
        %v915 = vld [vmem:[#allocation11 + $0xc] sm:$0xf]
        %v916 = vld [vmem:[#allocation11 + $0x10] sm:$0xf]
        %v917 = vld [vmem:[#allocation11 + $0x14] sm:$0xf]
        %v918 = vld [vmem:[#allocation11 + $0x18] sm:$0xf]
        %v919 = vld [vmem:[#allocation11 + $0x1c] sm:$0xf]
        %v920 = vld [vmem:[#allocation11 + $0x20] sm:$0xf]
        %v921 = vld [vmem:[#allocation11 + $0x24] sm:$0xf]
        %v922 = vld [vmem:[#allocation11 + $0x28] sm:$0xf]
        %v923 = vld [vmem:[#allocation11 + $0x2c] sm:$0xf]
        %v924 = vld [vmem:[#allocation11 + $0x30] sm:$0xf]
        %v925 = vld [vmem:[#allocation11 + $0x34] sm:$0xf]
        %v926 = vld [vmem:[#allocation11 + $0x38] sm:$0xf]
        %v927 = vld [vmem:[#allocation11 + $0x3c] sm:$0xf]
        %v928 = vld [vmem:[%s9] sm:$0x1]
        %v930 = vlaneseq
        %v931 = vshrl.u32 %v930, 7
        %v932 = vsub.s32 0, %v931
        %v933 = vrot.slane %v928, %v932
        %v951 = vunpack.c.l.b16 %v912
        %v952 = vunpack.c.l.b16 %v913
        %v953 = vunpack.c.l.b16 %v914
        %v954 = vunpack.c.l.b16 %v915
        %v955 = vunpack.c.l.b16 %v916
        %v956 = vunpack.c.l.b16 %v917
        %v957 = vunpack.c.l.b16 %v918
        %v958 = vunpack.c.l.b16 %v919
        %v959 = vunpack.c.l.b16 %v920
        %v960 = vunpack.c.l.b16 %v921
        %v961 = vunpack.c.l.b16 %v922
        %v962 = vunpack.c.l.b16 %v923
        %v963 = vunpack.c.l.b16 %v924
        %v964 = vunpack.c.l.b16 %v925
        %v965 = vunpack.c.l.b16 %v926
        %v966 = vunpack.c.l.b16 %v927
        %v967 = vpack.c.b16 %v952, %v951
        %v968 = vpack.c.b16 %v954, %v953
        %v969 = vpack.c.b16 %v956, %v955
        %v970 = vpack.c.b16 %v958, %v957
        %v971 = vpack.c.b16 %v960, %v959
        %v972 = vpack.c.b16 %v962, %v961
        %v973 = vpack.c.b16 %v964, %v963
        %v974 = vpack.c.b16 %v966, %v965
        %983 = vmatprep.subr.bf16.mxu0 0
        %984 = vmatpush1.bf16.msra.mxu0 %v967
        %985 = vmatprep.subr.bf16.mxu0 0
        %986 = vmatpush1.bf16.msra.mxu0 %v968
        %987 = vmatprep.subr.bf16.mxu0 0
        %988 = vmatpush1.bf16.msra.mxu0 %v969
        %989 = vmatprep.subr.bf16.mxu0 0
        %990 = vmatpush1.bf16.msra.mxu0 %v970
        %991 = vmatprep.subr.bf16.mxu0 0
        %992 = vmatpush1.bf16.msra.mxu0 %v971
        %993 = vmatprep.subr.bf16.mxu0 0
        %994 = vmatpush1.bf16.msra.mxu0 %v972
        %995 = vmatprep.subr.bf16.mxu0 0
        %996 = vmatpush1.bf16.msra.mxu0 %v973
        %997 = vmatprep.subr.bf16.mxu0 0
        %998 = vmatpush1.bf16.msra.mxu0 %v974
        %999 = vmatprep.subr.bf16.mxu0 0
        %1000 = vmatpush1.bf16.msra.mxu0 0
        %1001 = vmatprep.subr.bf16.mxu0 0
        %1002 = vmatpush1.bf16.msra.mxu0 0
        %1003 = vmatprep.subr.bf16.mxu0 0
        %1004 = vmatpush1.bf16.msra.mxu0 0
        %1005 = vmatprep.subr.bf16.mxu0 0
        %1006 = vmatpush1.bf16.msra.mxu0 0
        %1007 = vmatprep.subr.bf16.mxu0 0
        %1008 = vmatpush1.bf16.msra.mxu0 0
        %1009 = vmatprep.subr.bf16.mxu0 0
        %1010 = vmatpush1.bf16.msra.mxu0 0
        %1011 = vmatprep.subr.bf16.mxu0 0
        %1012 = vmatpush1.bf16.msra.mxu0 0
        %1013 = vmatprep.subr.bf16.mxu0 0
        %1014 = vmatpush1.bf16.msra.mxu0 0
        %1015 = vmatprep.mubr.bf16.mxu0 0
        %1016 = vmatmul.mubr.bf16.gmra.mrb[0].mxu0 %v911
        %v1017 = vpop.f32.mrb[0].mxu0
        %v1018 = vadd.f32 %v933, %v1017
        %v1019 = vpop.f32.mrb[0].mxu0
        %v1020 = vpop.f32.mrb[0].mxu0
        %v1021 = vadd.f32 %v933, %v1020
        %v1022 = vpop.f32.mrb[0].mxu0
        %1023 = vdwg.mxu0
        %v1024 = vmul.f32 %v682, %v909
        %v1025 = vmul.f32 %v683, %v910
        %1026 = vadd.xlane.f32.xlu0 %v1024
        %v1027 = vpop.xlane.xlu0 %1026
        %1028 = vadd.xlane.f32.xlu0 %v1025
        %v1029 = vpop.xlane.xlu0 %1028
        %vm1030 = vcmask 7168
        %1031 = vst.msk [vmem:[%s554] sm:$0xff] %vm1030, %v1027
        %1032 = vst.msk [vmem:[%s554 + $0x8] sm:$0xff] %vm1030, %v1029
        %v1033 = vpack.c.bf16 %v794, %v791
        %v1035 = vunpack.c.l.b16 %v1033
        %v1036 = vunpack.c.h.b16 %v1033
        %v1037 = vpack.c.b16 %v1035, %v1035
        %v1038 = vpack.c.b16 %v1036, %v1036
        %1041 = vst [vmem:[%s540] sm:$0xf] %v1037
        %1042 = vst [vmem:[%s540 + $0x4] sm:$0xf] %v1038
        %v1043 = vpack.c.bf16 %v1021, %v1018
        %v1045 = vunpack.c.l.b16 %v1043
        %v1046 = vunpack.c.h.b16 %v1043
        %v1047 = vpack.c.b16 %v1045, %v1045
        %v1048 = vpack.c.b16 %v1046, %v1046
        %1051 = vst [vmem:[%s547] sm:$0xf] %v1047
        %1052 = vst [vmem:[%s547 + $0x4] sm:$0xf] %v1048
        %s1053 = smul.u32 2, %s38
        %p1054 = scmp.lt.s32.totalorder %s1053, 3
        %s1055 = scalar_select %p1054, %s1053, 3
        %s1056 = smul.addr %s1055, 8
        %s1057 = scalar_lea.vmem %s10, %s1056
        %s1058 = sand.u32 %s292, 1
        %s1059 = scalar_lea.sflag [#allocation4], %s1058
        %s1060 = sand.u32 %s292, 1
        %s1061 = smul.addr %s1060, 8
        %s1062 = scalar_lea.vmem [#allocation13], %s1061
        %s1063 = sand.u32 %s318, 1
        %s1064 = scalar_lea.sflag [#allocation15], %s1063
        %s1065 = sand.u32 %s318, 1
        %s1066 = smul.addr %s1065, 8
        %s1067 = scalar_lea.vmem [#allocation14], %s1066
        // Predicated region
        $region85: #{tpu_custom_call.1} parent=59 // pred_check
          %p1068 = pneg %p276
        $region86: #{tpu_custom_call.1} parent=59 // pred_check_branch
          %1070 = sbr.rel (%p1068) target = $region88
        $region87: #{tpu_custom_call.1} parent=59 // pred_region
          %s1071 = smul.u32 2, %s38
        $region88: #{tpu_custom_call.1} parent=59 // pred_fallthru
          _
        // Predicated region
        $region89: #{tpu_custom_call.1} parent=59 // pred_check
          %p1072 = pneg %p302
        $region90: #{tpu_custom_call.1} parent=59 // pred_check_branch
          %1074 = sbr.rel (%p1072) target = $region92
        $region91: #{tpu_custom_call.1} parent=59 // pred_region
          %s1075 = smul.u32 2, %s38
          %s1077 = ssub.s32 128, 128
          %1078 = vsyncadd %s1059, %s1077
          %s1079 = smul.addr %s1075, 64
          %s1080 = scalar_lea.hbm %s11, %s1079
          %s1081 = sshll.u32 %s1062, 4
          %s1082 = int_to_ptr.vmem [resolvable:$true] %s1081
          %1087 = dma.vmem_to_hbm [thread:$0]  %s1082, 128, %s1080, %s1059, 64, 64, 4
        $region92: #{tpu_custom_call.1} parent=59 // pred_fallthru
          _
        // Predicated region
        $region93: #{tpu_custom_call.1} parent=59 // pred_check
          %p1088 = pneg %p328
        $region94: #{tpu_custom_call.1} parent=59 // pred_check_branch
          %1090 = sbr.rel (%p1088) target = $region96
        $region95: #{tpu_custom_call.1} parent=59 // pred_region
          %s1091 = smul.u32 2, %s38
          %s1093 = ssub.s32 128, 128
          %1094 = vsyncadd %s1064, %s1093
          %s1095 = smul.addr %s1091, 64
          %s1096 = scalar_lea.hbm %s12, %s1095
          %s1097 = sshll.u32 %s1067, 4
          %s1098 = int_to_ptr.vmem [resolvable:$true] %s1097
          %1103 = dma.vmem_to_hbm [thread:$0]  %s1098, 128, %s1096, %s1064, 64, 64, 4
        $region96: #{tpu_custom_call.1} parent=59 // pred_fallthru
          _
      $region60: #{tpu_custom_call.1} parent=5 // pred_fallthru
        _
      %p1104 = scmp.le.s32.totalorder 2, %s33
      // Predicated region
      $region97: #{tpu_custom_call.1} parent=5 // pred_check
        %p1105 = pneg %p1104
      $region98: #{tpu_custom_call.1} parent=5 // pred_check_branch
        %1107 = sbr.rel (%p1105) target = $region100
      $region99: #{tpu_custom_call.1} parent=5 // pred_region
        %s1108 = ssub.s32 %s33, 2
        // Predicated region
        $region101: #{tpu_custom_call.1} parent=99 // pred_check
          %p1109 = pneg %p282
        $region102: #{tpu_custom_call.1} parent=99 // pred_check_branch
          %1111 = sbr.rel (%p1109) target = $region104
        $region103: #{tpu_custom_call.1} parent=99 // pred_region
          %s1112 = smul.u32 2, %s39
          %p1113 = scmp.lt.s32.totalorder %s1112, 3
          %s1114 = scalar_select %p1113, %s1112, 3
          %s1115 = smul.addr %s1114, 8
          %s1116 = scalar_lea.vmem %s10, %s1115
        $region104: #{tpu_custom_call.1} parent=99 // pred_fallthru
          _
        // Predicated region
        $region105: #{tpu_custom_call.1} parent=99 // pred_check
          %p1117 = pneg %p308
        $region106: #{tpu_custom_call.1} parent=99 // pred_check_branch
          %1119 = sbr.rel (%p1117) target = $region108
        $region107: #{tpu_custom_call.1} parent=99 // pred_region
          %s1120 = sand.u32 %s293, 1
          %s1121 = scalar_lea.sflag [#allocation4], %s1120
          %s1122 = sand.u32 %s293, 1
          %s1123 = smul.addr %s1122, 8
          %s1124 = scalar_lea.vmem [#allocation13], %s1123
          %1125 = dma.done %s1121, 128
        $region108: #{tpu_custom_call.1} parent=99 // pred_fallthru
          _
        // Predicated region
        $region109: #{tpu_custom_call.1} parent=99 // pred_check
          %p1126 = pneg %p334
        $region110: #{tpu_custom_call.1} parent=99 // pred_check_branch
          %1128 = sbr.rel (%p1126) target = $region112
        $region111: #{tpu_custom_call.1} parent=99 // pred_region
          %s1129 = sand.u32 %s319, 1
          %s1130 = scalar_lea.sflag [#allocation15], %s1129
          %s1131 = sand.u32 %s319, 1
          %s1132 = smul.addr %s1131, 8
          %s1133 = scalar_lea.vmem [#allocation14], %s1132
          %1134 = dma.done %s1130, 128
        $region112: #{tpu_custom_call.1} parent=99 // pred_fallthru
          _
      $region100: #{tpu_custom_call.1} parent=5 // pred_fallthru
        _
    $region6: #{tpu_custom_call.1} parent=1 // loop_footer
      %s37 = sadd.s32 1, %s33
    $region7: #{tpu_custom_call.1} parent=1 // loop_footer_branch
      %32 = sbr.rel target = $region3
    $region8: #{tpu_custom_call.1} parent=1 // loop_exit
      _
    %1135 = vsyncpa [#allocation3], 1
    %s1136 = scalar_lea.sflag [#allocation3], 1
    %1137 = vsyncpa %s1136, 1
    %1138 = vsyncpa [#allocation6], 1
    %s1139 = scalar_lea.sflag [#allocation6], 1
    %1140 = vsyncpa %s1139, 1
    %1141 = vsyncpa [#allocation9], 1
    %1142 = vsyncpa [#allocation12], 1
    %1143 = vsyncpa [#allocation4], 1
    %s1144 = scalar_lea.sflag [#allocation4], 1
    %1145 = vsyncpa %s1144, 1
    %1146 = vsyncpa [#allocation15], 1
    %s1147 = scalar_lea.sflag [#allocation15], 1
    %1148 = vsyncpa %s1147, 1

</llo_original>
